<compile_context>
chip_gen: v5e
topology: v5e:2x2
jax: 0.10.0
libtpu: 0.0.40
codegen_flags: <defaults>
</compile_context>

<pallas_src>
import jax
import jax.numpy as jnp
from jax.experimental import pallas as pl
from jax.experimental.pallas import tpu as pltpu


_MAX_HW_TILE = 2048  # lanes per grid step once images get big (multiple of 128)


# ----------------------------- Pallas kernel ------------------------------- #
def _mlp_kernel(x_ref, w1_ref, b1_ref, w2_ref, b2_ref, o_ref):
    # x_ref : (B*C_in,  HW_TILE)  whole batch folded onto sublanes, pixels on lanes
    # w1    : (B*HID,   B*C_in)   block-diagonal       b1: (B*HID,  1)
    # w2    : (B*C_out, B*HID)    block-diagonal       b2: (B*C_out, 1)
    # o_ref : (B*C_out, HW_TILE)
    x = x_ref[...]
    h = jnp.dot(w1_ref[...], x, preferred_element_type=jnp.float32)   # (B*HID, HW_TILE)
    h = jnp.maximum(h + b1_ref[...], 0.0)
    y = jnp.dot(w2_ref[...], h, preferred_element_type=jnp.float32)   # (B*C_out, HW_TILE)
    o_ref[...] = (y + b2_ref[...]).astype(o_ref.dtype)


def _choose_hw_tiling(hw):
    """Pad HW to a lane-dense size and pick a lane tile (both multiples of 128)."""
    hw_pad = -(-hw // 128) * 128
    if hw_pad <= _MAX_HW_TILE:
        return hw_pad, hw_pad
    hw_pad = -(-hw_pad // _MAX_HW_TILE) * _MAX_HW_TILE
    return hw_pad, _MAX_HW_TILE


def _fused_mlp(x2d, w1, b1, w2, b2, hw_tile):
    """x2d: (B*C_in, HW_pad) f32; params stacked on a leading model axis M.

    Returns (M, B*C_out, HW_pad) f32 with a single pallas_call,
    grid = (M models, HW tiles), both axes "parallel".
    """
    bc_in, hw_pad = x2d.shape
    m, bhid, _ = w1.shape
    bc_out = w2.shape[1]
    num_tiles = hw_pad // hw_tile

    flops = 2 * m * hw_pad * (bhid * bc_in + bc_out * bhid)
    bytes_accessed = 4 * (m * x2d.size + m * bc_out * hw_pad
                          + w1.size + b1.size + w2.size + b2.size)

    return pl.pallas_call(
        _mlp_kernel,
        out_shape=jax.ShapeDtypeStruct((m, bc_out, hw_pad), jnp.float32),
        grid_spec=pltpu.PrefetchScalarGridSpec(
            num_scalar_prefetch=0,
            grid=(m, num_tiles),
            in_specs=[
                # Activations: full sublane extent, lane tile multiple of 128.
                pl.BlockSpec((bc_in, hw_tile), lambda mi, ti: (0, ti)),
                # Packed params: one model's block picked by the model axis;
                # block index constant across HW tiles -> no re-DMA per tile.
                pl.BlockSpec((None, bhid, bc_in), lambda mi, ti: (mi, 0, 0)),
                pl.BlockSpec((None, bhid, 1),     lambda mi, ti: (mi, 0, 0)),
                pl.BlockSpec((None, bc_out, bhid), lambda mi, ti: (mi, 0, 0)),
                pl.BlockSpec((None, bc_out, 1),    lambda mi, ti: (mi, 0, 0)),
            ],
            out_specs=pl.BlockSpec((None, bc_out, hw_tile),
                                   lambda mi, ti: (mi, 0, ti)),
        ),
        compiler_params=pltpu.CompilerParams(
            dimension_semantics=("parallel", "parallel"),
            vmem_limit_bytes=32 * 1024 * 1024,   # safe on v5e/v6e/v7x
        ),
        cost_estimate=pl.CostEstimate(
            flops=flops, transcendentals=0, bytes_accessed=bytes_accessed),
    )(x2d, w1, b1, w2, b2)


@jax.jit
def _forward_impl(data, w1, b1, w2, b2):
    """data: NCHW f32; params: (M, ...) block-diagonal packs.

    Returns (M, B, C_out, H, W) f32.  Reshapes are free (contiguous NCHW);
    padding/slicing only happens when H*W is not a multiple of 128.
    """
    B, C_in, H, W = data.shape
    M = w1.shape[0]
    C_out = w2.shape[1] // B
    HW = H * W

    x2d = data.reshape(B * C_in, HW)
    hw_pad, hw_tile = _choose_hw_tiling(HW)
    if hw_pad != HW:
        x2d = jnp.pad(x2d, ((0, 0), (0, hw_pad - HW)))

    y = _fused_mlp(x2d, w1, b1, w2, b2, hw_tile)        # (M, B*C_out, hw_pad)
    if hw_pad != HW:
        y = y[:, :, :HW]
    return y.reshape(M, B, C_out, H, W)


# ------------------------- StudentTeacher wrapper --------------------------- #
def _init_model_params(key, c_in, hidden, c_out):
    k1, k2, k3, k4 = jax.random.split(key, 4)
    # Stored pre-transposed for the pixels-on-lanes kernel layout.
    return {
        "w1t": jax.random.normal(k1, (hidden, c_in), jnp.float32) * 0.1,
        "b1":  jax.random.normal(k2, (hidden, 1), jnp.float32) * 0.1,
        "w2t": jax.random.normal(k3, (c_out, hidden), jnp.float32) * 0.1,
        "b2":  jax.random.normal(k4, (c_out, 1), jnp.float32) * 0.1,
    }


class StudentTeacher:
    """JAX/Pallas equivalent of the PyTorch StudentTeacher ModuleDict wrapper."""

    def __init__(self, c_in=4, hidden=32, c_out=4):
        base = jax.random.PRNGKey(0)
        k_student, k_teacher = jax.random.split(base)
        self.model = {
            "student": _init_model_params(k_student, c_in, hidden, c_out),
            "teacher": _init_model_params(k_teacher, c_in, hidden, c_out),
        }
        self._packed_cache = {}   # (model_kinds, B) -> block-diag packed params

    def get(self, model_kind):
        return self.model[model_kind]

    def _packed(self, model_kinds, batch):
        """Block-diagonal batch-folded params, stacked on a leading model axis."""
        key = (tuple(model_kinds), batch)
        if key not in self._packed_cache:
            eye = jnp.eye(batch, dtype=jnp.float32)
            w1, b1, w2, b2 = [], [], [], []
            for mk in model_kinds:
                p = self.model[mk]
                w1.append(jnp.kron(eye, p["w1t"]))       # (B*HID,   B*C_in)
                b1.append(jnp.tile(p["b1"], (batch, 1)))  # (B*HID,   1)
                w2.append(jnp.kron(eye, p["w2t"]))       # (B*C_out, B*HID)
                b2.append(jnp.tile(p["b2"], (batch, 1)))  # (B*C_out, 1)
            self._packed_cache[key] = tuple(
                jnp.stack(v) for v in (w1, b1, w2, b2))
        return self._packed_cache[key]

    def forward(self, model_kind, data):
        # NOTE: the PyTorch forward discards the result (returns None); we
        # return the activation here so the kernel output can be checked.
        w1, b1, w2, b2 = self._packed((model_kind,), data.shape[0])
        return _forward_impl(data, w1, b1, w2, b2)[0]

    def forward_both(self, data):
        """Distillation fast path: student + teacher in ONE pallas_call."""
        w1, b1, w2, b2 = self._packed(("student", "teacher"), data.shape[0])
        y = _forward_impl(data, w1, b1, w2, b2)
        return {"student": y[0], "teacher": y[1]}

    __call__ = forward


# ---------------------------------- main ------------------------------------ #
if __name__ == "__main__":
    key = jax.random.PRNGKey(0)
    x = jax.random.normal(key, (2, 4, 16, 16), jnp.float32)   # NCHW

    st = StudentTeacher(c_in=4, hidden=32, c_out=4)

    y_student = st("student", x)
    y_teacher = st("teacher", x)
    both = st.forward_both(x)
    jax.block_until_ready((y_student, y_teacher, both))

    # Reference check against plain-JAX math (same transposed-weight layout).
    def ref(params, data):
        B, C, H, W = data.shape
        xx = data.reshape(B, C, H * W)                                  # (B,C,HW)
        h = jnp.maximum(
            jnp.einsum("hc,bcp->bhp", params["w1t"], xx) + params["b1"][None],
            0.0)
        y = jnp.einsum("oh,bhp->bop", params["w2t"], h) + params["b2"][None]
        return y.reshape(B, -1, H, W)

    assert jnp.allclose(y_student, ref(st.get("student"), x), atol=1e-5)
    assert jnp.allclose(y_teacher, ref(st.get("teacher"), x), atol=1e-5)
    assert jnp.allclose(both["student"], y_student, atol=1e-6)
    assert jnp.allclose(both["teacher"], y_teacher, atol=1e-6)
    assert y_student.shape == (2, 4, 16, 16)
    assert y_teacher.shape == (2, 4, 16, 16)

    print("KERNEL_OK")
</pallas_src>

<mosaic_0001>
module attributes {stable_mosaic.version = 11 : i64} {
  func.func @_mlp_kernel(%arg0: i32, %arg1: i32, %arg2: memref<8x256xf32, #tpu.memory_space<vmem>>, %arg3: memref<1x64x8xf32, #tpu.memory_space<vmem>>, %arg4: memref<1x64x1xf32, #tpu.memory_space<vmem>>, %arg5: memref<1x8x64xf32, #tpu.memory_space<vmem>>, %arg6: memref<1x8x1xf32, #tpu.memory_space<vmem>>, %arg7: memref<1x8x256xf32, #tpu.memory_space<vmem>>) attributes {dimension_semantics = [#tpu.dimension_semantics<parallel>, #tpu.dimension_semantics<parallel>], iteration_bounds = array<i64: 1, 1>, scalar_prefetch = 0 : i64, scratch_operands = 0 : i64, tpu.core_type = #tpu.core_type<tc>, window_params = [{transform_indices = @transform_0, window_bounds = array<i64: 8, 256>}, {transform_indices = @transform_1, window_bounds = array<i64: 1, 64, 8>}, {transform_indices = @transform_2, window_bounds = array<i64: 1, 64, 1>}, {transform_indices = @transform_3, window_bounds = array<i64: 1, 8, 64>}, {transform_indices = @transform_4, window_bounds = array<i64: 1, 8, 1>}, {transform_indices = @transform_5, window_bounds = array<i64: 1, 8, 256>}]} {
    %c0 = arith.constant 0 : index
    %c0_0 = arith.constant 0 : index
    %0 = vector.load %arg2[%c0, %c0_0] : memref<8x256xf32, #tpu.memory_space<vmem>>, vector<8x256xf32>
    %c0_1 = arith.constant 0 : index
    %c0_2 = arith.constant 0 : index
    %c0_3 = arith.constant 0 : index
    %1 = vector.load %arg3[%c0_1, %c0_2, %c0_3] : memref<1x64x8xf32, #tpu.memory_space<vmem>>, vector<1x64x8xf32>
    %2 = vector.shape_cast %1 : vector<1x64x8xf32> to vector<64x8xf32>
    %cst = arith.constant dense<0.000000e+00> : vector<64x256xf32>
    %3 = tpu.matmul %2, %0, %cst {dimension_numbers = #tpu.dot_dimension_numbers<[1], [0], [0], [1], [0, 0, 1, 1], [], []>} : vector<64x8xf32>, vector<8x256xf32>, vector<64x256xf32> -> vector<64x256xf32>
    %c0_4 = arith.constant 0 : index
    %c0_5 = arith.constant 0 : index
    %c0_6 = arith.constant 0 : index
    %4 = vector.load %arg4[%c0_4, %c0_5, %c0_6] : memref<1x64x1xf32, #tpu.memory_space<vmem>>, vector<1x64x1xf32>
    %5 = vector.shape_cast %4 : vector<1x64x1xf32> to vector<64x1xf32>
    %6 = vector.broadcast %5 : vector<64x1xf32> to vector<64x256xf32>
    %7 = arith.addf %3, %6 : vector<64x256xf32>
    %cst_7 = arith.constant 0.000000e+00 : f32
    %8 = vector.broadcast %cst_7 : f32 to vector<64x256xf32>
    %9 = arith.maximumf %7, %8 : vector<64x256xf32>
    %c0_8 = arith.constant 0 : index
    %c0_9 = arith.constant 0 : index
    %c0_10 = arith.constant 0 : index
    %10 = vector.load %arg5[%c0_8, %c0_9, %c0_10] : memref<1x8x64xf32, #tpu.memory_space<vmem>>, vector<1x8x64xf32>
    %11 = vector.shape_cast %10 : vector<1x8x64xf32> to vector<8x64xf32>
    %cst_11 = arith.constant dense<0.000000e+00> : vector<8x256xf32>
    %12 = tpu.matmul %11, %9, %cst_11 {dimension_numbers = #tpu.dot_dimension_numbers<[1], [0], [0], [1], [0, 0, 1, 1], [], []>} : vector<8x64xf32>, vector<64x256xf32>, vector<8x256xf32> -> vector<8x256xf32>
    %c0_12 = arith.constant 0 : index
    %c0_13 = arith.constant 0 : index
    %c0_14 = arith.constant 0 : index
    %13 = vector.load %arg6[%c0_12, %c0_13, %c0_14] : memref<1x8x1xf32, #tpu.memory_space<vmem>>, vector<1x8x1xf32>
    %14 = vector.shape_cast %13 : vector<1x8x1xf32> to vector<8x1xf32>
    %15 = vector.broadcast %14 : vector<8x1xf32> to vector<8x256xf32>
    %16 = arith.addf %12, %15 : vector<8x256xf32>
    %c0_15 = arith.constant 0 : index
    %c0_16 = arith.constant 0 : index
    %c0_17 = arith.constant 0 : index
    %17 = vector.load %arg7[%c0_15, %c0_16, %c0_17] : memref<1x8x256xf32, #tpu.memory_space<vmem>>, vector<1x8x256xf32>
    %18 = vector.shape_cast %17 : vector<1x8x256xf32> to vector<8x256xf32>
    %19 = vector.shape_cast %16 : vector<8x256xf32> to vector<1x8x256xf32>
    tpu.vector_store %arg7[%c0_15, %c0_16, %c0_17], %19 {strides = array<i32>} : memref<1x8x256xf32, #tpu.memory_space<vmem>>, vector<1x8x256xf32>,
    return
  }
  func.func @transform_0(%arg0: i32, %arg1: i32) -> (i32, i32) {
    %c0_i32 = arith.constant 0 : i32
    %c0_i32_0 = arith.constant 0 : i32
    return %c0_i32, %arg1 : i32, i32
  }
  func.func @transform_1(%arg0: i32, %arg1: i32) -> (i32, i32, i32) {
    %c0_i32 = arith.constant 0 : i32
    %c0_i32_0 = arith.constant 0 : i32
    %c0_i32_1 = arith.constant 0 : i32
    return %arg0, %c0_i32, %c0_i32_0 : i32, i32, i32
  }
  func.func @transform_2(%arg0: i32, %arg1: i32) -> (i32, i32, i32) {
    %c0_i32 = arith.constant 0 : i32
    %c0_i32_0 = arith.constant 0 : i32
    %c0_i32_1 = arith.constant 0 : i32
    return %arg0, %c0_i32, %c0_i32_0 : i32, i32, i32
  }
  func.func @transform_3(%arg0: i32, %arg1: i32) -> (i32, i32, i32) {
    %c0_i32 = arith.constant 0 : i32
    %c0_i32_0 = arith.constant 0 : i32
    %c0_i32_1 = arith.constant 0 : i32
    return %arg0, %c0_i32, %c0_i32_0 : i32, i32, i32
  }
  func.func @transform_4(%arg0: i32, %arg1: i32) -> (i32, i32, i32) {
    %c0_i32 = arith.constant 0 : i32
    %c0_i32_0 = arith.constant 0 : i32
    %c0_i32_1 = arith.constant 0 : i32
    return %arg0, %c0_i32, %c0_i32_0 : i32, i32, i32
  }
  func.func @transform_5(%arg0: i32, %arg1: i32) -> (i32, i32, i32) {
    %c0_i32 = arith.constant 0 : i32
    %c0_i32_0 = arith.constant 0 : i32
    return %arg0, %c0_i32, %arg1 : i32, i32, i32
  }
}

</mosaic_0001>

<llo_original>
// kernel: _forward_impl.1
$region0: #{_forward_impl.1}
  #allocation0 [shape = 'u32[]', space=smem, size = 0x4, offset = 0x4, fixed_abs, tag = 'smem constant byte address 0x4 - core index']
  #allocation1 [shape = 'u32[72,128]{1,0:T(1,128)}', space=vmem, size = 0x9000, scoped, tag = 'internal scratch']
  %s0 = inlined_call_operand.vmem [shape: f32[8,256], index: 0, kind: input, shape index: {}]
  %s1 = inlined_call_operand.vmem [shape: f32[1,64,8], index: 1, kind: input, shape index: {}]
  %s2 = inlined_call_operand.vmem [shape: f32[1,64,1], index: 2, kind: input, shape index: {}]
  %s3 = inlined_call_operand.vmem [shape: f32[1,8,64], index: 3, kind: input, shape index: {}]
  %s4 = inlined_call_operand.vmem [shape: f32[1,8,1], index: 4, kind: input, shape index: {}]
  %s5 = inlined_call_operand.vmem [shape: f32[1,8,256], index: 5, kind: output, shape index: {}]
  %s6 = sld [smem:[#allocation0]]
  $region30: #{_forward_impl.1} parent=0
    _
  %s8 = ssub.s32 1, %s6
  %s9 = scalar_select 0, %s8, %s6
  // Predicated region
  $region2: #{_forward_impl.1} parent=0 // pred_check
    _
  $region3: #{_forward_impl.1} parent=0 // pred_check_branch
    %11 = sbr.rel (0) target = $region5
  $region4: #{_forward_impl.1} parent=0 // pred_region
    _
  $region5: #{_forward_impl.1} parent=0 // pred_fallthru
    _
  // Predicated region
  $region6: #{_forward_impl.1} parent=0 // pred_check
    _
  $region7: #{_forward_impl.1} parent=0 // pred_check_branch
    %13 = sbr.rel (0) target = $region9
  $region8: #{_forward_impl.1} parent=0 // pred_region
    _
  $region9: #{_forward_impl.1} parent=0 // pred_fallthru
    _
  // Predicated region
  $region10: #{_forward_impl.1} parent=0 // pred_check
    _
  $region11: #{_forward_impl.1} parent=0 // pred_check_branch
    %15 = sbr.rel (0) target = $region13
  $region12: #{_forward_impl.1} parent=0 // pred_region
    _
  $region13: #{_forward_impl.1} parent=0 // pred_fallthru
    _
  // Predicated region
  $region14: #{_forward_impl.1} parent=0 // pred_check
    _
  $region15: #{_forward_impl.1} parent=0 // pred_check_branch
    %17 = sbr.rel (0) target = $region17
  $region16: #{_forward_impl.1} parent=0 // pred_region
    _
  $region17: #{_forward_impl.1} parent=0 // pred_fallthru
    _
  // Predicated region
  $region18: #{_forward_impl.1} parent=0 // pred_check
    _
  $region19: #{_forward_impl.1} parent=0 // pred_check_branch
    %19 = sbr.rel (0) target = $region21
  $region20: #{_forward_impl.1} parent=0 // pred_region
    _
  $region21: #{_forward_impl.1} parent=0 // pred_fallthru
    _
  %v20 = vld [vmem:[%s0] sm:$0xff]
  %v21 = vld [vmem:[%s0 + $0x8] sm:$0xff]
  %v22 = vld [vmem:[%s1] sm:$0xff]
  %v23 = vld [vmem:[%s1 + $0x8] sm:$0xff]
  %v24 = vld [vmem:[%s1 + $0x10] sm:$0xff]
  %v25 = vld [vmem:[%s1 + $0x18] sm:$0xff]
  %v26 = vld [vmem:[%s1 + $0x20] sm:$0xff]
  %v27 = vld [vmem:[%s1 + $0x28] sm:$0xff]
  %v28 = vld [vmem:[%s1 + $0x30] sm:$0xff]
  %v29 = vld [vmem:[%s1 + $0x38] sm:$0xff]
  %v30 = vld [vmem:[%s2] sm:$0xff]
  %v31 = vld [vmem:[%s2 + $0x8] sm:$0xff]
  %v32 = vld [vmem:[%s2 + $0x10] sm:$0xff]
  %v33 = vld [vmem:[%s2 + $0x18] sm:$0xff]
  %v34 = vld [vmem:[%s2 + $0x20] sm:$0xff]
  %v35 = vld [vmem:[%s2 + $0x28] sm:$0xff]
  %v36 = vld [vmem:[%s2 + $0x30] sm:$0xff]
  %v37 = vld [vmem:[%s2 + $0x38] sm:$0xff]
  %39 = vset.pattern.permute.xlu0 0
  %40 = vperm.xlu0 %39, %v30
  %v41 = vpop.permute.xlu0 %40
  %44 = vset.pattern.permute.xlu0 0
  %45 = vperm.xlu0 %44, %v31
  %v46 = vpop.permute.xlu0 %45
  %49 = vset.pattern.permute.xlu0 0
  %50 = vperm.xlu0 %49, %v32
  %v51 = vpop.permute.xlu0 %50
  %54 = vset.pattern.permute.xlu0 0
  %55 = vperm.xlu0 %54, %v33
  %v56 = vpop.permute.xlu0 %55
  %59 = vset.pattern.permute.xlu0 0
  %60 = vperm.xlu0 %59, %v34
  %v61 = vpop.permute.xlu0 %60
  %64 = vset.pattern.permute.xlu0 0
  %65 = vperm.xlu0 %64, %v35
  %v66 = vpop.permute.xlu0 %65
  %69 = vset.pattern.permute.xlu0 0
  %70 = vperm.xlu0 %69, %v36
  %v71 = vpop.permute.xlu0 %70
  %74 = vset.pattern.permute.xlu0 0
  %75 = vperm.xlu0 %74, %v37
  %v76 = vpop.permute.xlu0 %75
  %vm78 = vcmask 64512
  %v80 = vsel %vm78, %v22, 0
  %v83 = vsel %vm78, %v23, 0
  %v86 = vsel %vm78, %v24, 0
  %v89 = vsel %vm78, %v25, 0
  %v92 = vsel %vm78, %v26, 0
  %v95 = vsel %vm78, %v27, 0
  %v98 = vsel %vm78, %v28, 0
  %v101 = vsel %vm78, %v29, 0
  %103 = vmatpush.msra.mxu0 0.0
  %104 = vmatpush.msra.mxu0 0.0
  %105 = vmatpush.msra.mxu0 0.0
  %106 = vmatpush.msra.mxu0 0.0
  %107 = vmatpush.msra.mxu0 0.0
  %108 = vmatpush.msra.mxu0 0.0
  %109 = vmatpush.msra.mxu0 0.0
  %110 = vmatpush.msra.mxu0 0.0
  %111 = vmatpush.msra.mxu0 0.0
  %112 = vmatpush.msra.mxu0 0.0
  %113 = vmatpush.msra.mxu0 0.0
  %114 = vmatpush.msra.mxu0 0.0
  %115 = vmatpush.msra.mxu0 0.0
  %116 = vmatpush.msra.mxu0 0.0
  %117 = vmatpush.msra.mxu0 0.0
  %118 = vmatpush.msra.mxu0 %v20
  %119 = vmatmul.f32.gmra.mxu0 %v80
  %v120 = vpop.f32.mrf.mxu0
  %v121 = vadd.f32 %v41, %v120
  %122 = vmatmul.f32.gmra.mxu0 %v83
  %v123 = vpop.f32.mrf.mxu0
  %v124 = vadd.f32 %v46, %v123
  %125 = vmatmul.f32.gmra.mxu0 %v86
  %v126 = vpop.f32.mrf.mxu0
  %v127 = vadd.f32 %v51, %v126
  %128 = vmatmul.f32.gmra.mxu0 %v89
  %v129 = vpop.f32.mrf.mxu0
  %v130 = vadd.f32 %v56, %v129
  %131 = vmatmul.f32.gmra.mxu0 %v92
  %v132 = vpop.f32.mrf.mxu0
  %v133 = vadd.f32 %v61, %v132
  %134 = vmatmul.f32.gmra.mxu0 %v95
  %v135 = vpop.f32.mrf.mxu0
  %v136 = vadd.f32 %v66, %v135
  %137 = vmatmul.f32.gmra.mxu0 %v98
  %v138 = vpop.f32.mrf.mxu0
  %v139 = vadd.f32 %v71, %v138
  %140 = vmatmul.f32.gmra.mxu0 %v101
  %v141 = vpop.f32.mrf.mxu0
  %v142 = vadd.f32 %v76, %v141
  %143 = vdwg.mxu0
  %144 = vmatpush.msra.mxu0 0.0
  %145 = vmatpush.msra.mxu0 0.0
  %146 = vmatpush.msra.mxu0 0.0
  %147 = vmatpush.msra.mxu0 0.0
  %148 = vmatpush.msra.mxu0 0.0
  %149 = vmatpush.msra.mxu0 0.0
  %150 = vmatpush.msra.mxu0 0.0
  %151 = vmatpush.msra.mxu0 0.0
  %152 = vmatpush.msra.mxu0 0.0
  %153 = vmatpush.msra.mxu0 0.0
  %154 = vmatpush.msra.mxu0 0.0
  %155 = vmatpush.msra.mxu0 0.0
  %156 = vmatpush.msra.mxu0 0.0
  %157 = vmatpush.msra.mxu0 0.0
  %158 = vmatpush.msra.mxu0 0.0
  %159 = vmatpush.msra.mxu0 %v21
  %160 = vmatmul.f32.gmra.mxu0 %v80
  %v161 = vpop.f32.mrf.mxu0
  %v162 = vadd.f32 %v41, %v161
  %163 = vmatmul.f32.gmra.mxu0 %v83
  %v164 = vpop.f32.mrf.mxu0
  %v165 = vadd.f32 %v46, %v164
  %166 = vmatmul.f32.gmra.mxu0 %v86
  %v167 = vpop.f32.mrf.mxu0
  %v168 = vadd.f32 %v51, %v167
  %169 = vmatmul.f32.gmra.mxu0 %v89
  %v170 = vpop.f32.mrf.mxu0
  %v171 = vadd.f32 %v56, %v170
  %172 = vmatmul.f32.gmra.mxu0 %v92
  %v173 = vpop.f32.mrf.mxu0
  %v174 = vadd.f32 %v61, %v173
  %175 = vmatmul.f32.gmra.mxu0 %v95
  %v176 = vpop.f32.mrf.mxu0
  %v177 = vadd.f32 %v66, %v176
  %178 = vmatmul.f32.gmra.mxu0 %v98
  %v179 = vpop.f32.mrf.mxu0
  %v180 = vadd.f32 %v71, %v179
  %181 = vmatmul.f32.gmra.mxu0 %v101
  %v182 = vpop.f32.mrf.mxu0
  %v183 = vadd.f32 %v76, %v182
  %184 = vdwg.mxu0
  %v185 = vmax.f32 %v121, 0.0
  %v186 = vmax.f32 %v162, 0.0
  %v187 = vmax.f32 %v124, 0.0
  %v188 = vmax.f32 %v165, 0.0
  %v189 = vmax.f32 %v127, 0.0
  %v190 = vmax.f32 %v168, 0.0
  %v191 = vmax.f32 %v130, 0.0
  %v192 = vmax.f32 %v171, 0.0
  %v193 = vmax.f32 %v133, 0.0
  %v194 = vmax.f32 %v174, 0.0
  %v195 = vmax.f32 %v136, 0.0
  %v196 = vmax.f32 %v177, 0.0
  %v197 = vmax.f32 %v139, 0.0
  %v198 = vmax.f32 %v180, 0.0
  %v199 = vmax.f32 %v142, 0.0
  %v200 = vmax.f32 %v183, 0.0
  %v201 = vld [vmem:[%s3] sm:$0xff]
  %v202 = vld [vmem:[%s4] sm:$0xff]
  %204 = vset.pattern.permute.xlu0 0
  %205 = vperm.xlu0 %204, %v202
  %v206 = vpop.permute.xlu0 %205
  %vm208 = vcmask 523264
  %v210 = vsel %vm208, %v201, 0
  %212 = vmatpush.msra.mxu0 0.0
  %213 = vmatpush.msra.mxu0 0.0
  %214 = vmatpush.msra.mxu0 0.0
  %215 = vmatpush.msra.mxu0 0.0
  %216 = vmatpush.msra.mxu0 0.0
  %217 = vmatpush.msra.mxu0 0.0
  %218 = vmatpush.msra.mxu0 0.0
  %219 = vmatpush.msra.mxu0 0.0
  %220 = vmatpush.msra.mxu0 %v199
  %221 = vmatpush.msra.mxu0 %v197
  %222 = vmatpush.msra.mxu0 %v195
  %223 = vmatpush.msra.mxu0 %v193
  %224 = vmatpush.msra.mxu0 %v191
  %225 = vmatpush.msra.mxu0 %v189
  %226 = vmatpush.msra.mxu0 %v187
  %227 = vmatpush.msra.mxu0 %v185
  %228 = vmatmul.f32.gmra.mxu0 %v210
  %v229 = vpop.f32.mrf.mxu0
  %v230 = vadd.f32 %v206, %v229
  %231 = vdwg.mxu0
  %232 = vmatpush.msra.mxu0 0.0
  %233 = vmatpush.msra.mxu0 0.0
  %234 = vmatpush.msra.mxu0 0.0
  %235 = vmatpush.msra.mxu0 0.0
  %236 = vmatpush.msra.mxu0 0.0
  %237 = vmatpush.msra.mxu0 0.0
  %238 = vmatpush.msra.mxu0 0.0
  %239 = vmatpush.msra.mxu0 0.0
  %240 = vmatpush.msra.mxu0 %v200
  %241 = vmatpush.msra.mxu0 %v198
  %242 = vmatpush.msra.mxu0 %v196
  %243 = vmatpush.msra.mxu0 %v194
  %244 = vmatpush.msra.mxu0 %v192
  %245 = vmatpush.msra.mxu0 %v190
  %246 = vmatpush.msra.mxu0 %v188
  %247 = vmatpush.msra.mxu0 %v186
  %248 = vmatmul.f32.gmra.mxu0 %v210
  %v249 = vpop.f32.mrf.mxu0
  %v250 = vadd.f32 %v206, %v249
  %251 = vdwg.mxu0
  %252 = vst [vmem:[%s5] sm:$0xff] %v230
  %253 = vst [vmem:[%s5 + $0x8] sm:$0xff] %v250
  // Predicated region
  $region22: #{_forward_impl.1} parent=0 // pred_check
    _
  $region23: #{_forward_impl.1} parent=0 // pred_check_branch
    %255 = sbr.rel (0) target = $region25
  $region24: #{_forward_impl.1} parent=0 // pred_region
    _
  $region25: #{_forward_impl.1} parent=0 // pred_fallthru
    _
  // Predicated region
  $region26: #{_forward_impl.1} parent=0 // pred_check
    _
  $region27: #{_forward_impl.1} parent=0 // pred_check_branch
    %257 = sbr.rel (0) target = $region29
  $region28: #{_forward_impl.1} parent=0 // pred_region
    _
  $region29: #{_forward_impl.1} parent=0 // pred_fallthru
    _

</llo_original>
